<compile_context>
chip_gen: v5e
topology: v5e:2x2
jax: 0.10.0
libtpu: 0.0.40
codegen_flags: <defaults>
</compile_context>

<pallas_src>
import jax
import jax.numpy as jnp
from jax.experimental import pallas as pl
from jax.experimental.pallas import tpu as pltpu

BIT = 64            # input feature dim
NUM_CLASSES = 51    # real output classes
PADDED_C = 128      # lane-dense padded class dim (multiple of 128)
NEG_INF = -1e30     # pad-lane bias -> exp() == 0, never the row max
TB_MAX = 1024       # batch-tile cap (roofline already; ~1 MiB working set)


def _round_up(n, m):
    return ((n + m - 1) // m) * m


def _net_kernel(x_ref, w_ref, b_ref, o_ref):
    # x_ref: (TB, 64) f32    w_ref: (64, 128) bf16
    # b_ref: (1, 128) f32 (pad lanes = -1e30)    o_ref: (TB, 128) bf16/f32
    x = x_ref[...].astype(jnp.bfloat16)          # VPU cast, free slot

    # Linear: bf16 operands, f32 accumulate on the MXU, f32 bias add.
    logits = jnp.dot(x, w_ref[...], preferred_element_type=jnp.float32)
    logits = logits + b_ref[...]

    # Numerically stable log-softmax, all reductions in f32. Pad lanes hold
    # ~-1e30, so they never win the max and contribute exp(...) == 0.
    m = jnp.max(logits, axis=-1, keepdims=True)
    shifted = logits - m
    lse = jnp.log(jnp.sum(jnp.exp(shifted), axis=-1, keepdims=True))
    o_ref[...] = (shifted - lse).astype(o_ref.dtype)


def prepare_params(w, b):
    """Pad (64, 51) / (51,) params to 128 lane-dense classes. Call ONCE and
    reuse the result across forward calls (hoisted out of the hot path)."""
    w_pad = jnp.zeros((BIT, PADDED_C), jnp.float32).at[:, :NUM_CLASSES].set(
        w.astype(jnp.float32))
    b_pad = jnp.full((1, PADDED_C), NEG_INF, jnp.float32).at[:, :NUM_CLASSES].set(
        jnp.reshape(b, (1, NUM_CLASSES)).astype(jnp.float32))
    return w_pad.astype(jnp.bfloat16), b_pad


def net_forward(x, w_padded_bf16, b_padded_f32, *, tile_cap=TB_MAX,
                out_dtype=jnp.bfloat16, slice_output=True):
    """x: (B, 64) f32, prepared params from prepare_params().
    Returns (B, 51) log-probs (or the lane-dense (B, 128) slab if
    slice_output=False; pad lanes are ~-1e30)."""
    B = x.shape[0]

    # Tile: aim for >= 8 grid steps (v7x megacore sharding + DMA/compute
    # overlap), cap at TB_MAX rows, keep a multiple of 8 sublanes.
    tb = max(8, min(tile_cap, _round_up(pl.cdiv(B, 8), 8)))
    grid = (pl.cdiv(B, tb),)   # ragged last block handled by Pallas masking

    out = pl.pallas_call(
        _net_kernel,
        out_shape=jax.ShapeDtypeStruct((B, PADDED_C), out_dtype),
        grid=grid,
        in_specs=[
            pl.BlockSpec((tb, BIT), lambda i: (i, 0)),          # x: batch-tiled
            pl.BlockSpec((BIT, PADDED_C), lambda i: (0, 0)),    # w: resident
            pl.BlockSpec((1, PADDED_C), lambda i: (0, 0)),      # b: resident
        ],
        out_specs=pl.BlockSpec((tb, PADDED_C), lambda i: (i, 0)),
        compiler_params=pltpu.CompilerParams(
            dimension_semantics=("parallel",)),
    )(x.astype(jnp.float32), w_padded_bf16, b_padded_f32)

    if slice_output:
        return out[:, :NUM_CLASSES]
    return out


def init_params(key):
    """nn.Linear(64, 51)-style init; weight stored transposed as (in, out)."""
    kw, kb = jax.random.split(key)
    bound = 1.0 / jnp.sqrt(jnp.float32(BIT))
    w = jax.random.uniform(kw, (BIT, NUM_CLASSES), jnp.float32, -bound, bound)
    b = jax.random.uniform(kb, (NUM_CLASSES,), jnp.float32, -bound, bound)
    return w, b


if __name__ == "__main__":
    key = jax.random.PRNGKey(0)
    kx, kp = jax.random.split(key)

    # Deliberately NOT a multiple of the 8-row tile: exercises the cdiv grid
    # and the masked partial last block.
    B = 10
    x = jax.random.normal(kx, (B, BIT), jnp.float32)
    w, b = init_params(kp)

    w_p, b_p = prepare_params(w, b)      # hoisted: pad + bf16 cast done once

    out = net_forward(x, w_p, b_p)       # default: bf16 output, sliced (B, 51)
    out = jax.block_until_ready(out)
    assert out.shape == (B, NUM_CLASSES)

    out_f32 = out.astype(jnp.float32)

    # Matching-precision reference (bf16 matmul, f32 accumulate + softmax).
    ref_logits = jnp.dot(x.astype(jnp.bfloat16), w.astype(jnp.bfloat16),
                         preferred_element_type=jnp.float32) + b
    ref_bf = jax.nn.log_softmax(ref_logits, axis=-1)
    assert jnp.allclose(out_f32, ref_bf, atol=3e-2, rtol=3e-2)

    # Full-f32 module reference (nn.Linear + log_softmax), bf16-cast tolerance.
    ref_f32 = jax.nn.log_softmax(x @ w + b, axis=-1)
    assert jnp.allclose(out_f32, ref_f32, atol=5e-2, rtol=5e-2)

    # log_softmax rows should sum (in prob space) to 1 (bf16-output tolerance).
    assert jnp.allclose(jnp.sum(jnp.exp(out_f32), axis=-1), 1.0, atol=2e-2)

    # Lane-dense slab path (no post-kernel slice) also works.
    slab = jax.block_until_ready(net_forward(x, w_p, b_p, slice_output=False))
    assert slab.shape == (B, PADDED_C)
    assert jnp.allclose(slab[:, :NUM_CLASSES].astype(jnp.float32), out_f32)

    print("KERNEL_OK")
</pallas_src>

<mosaic_0001>
module attributes {stable_mosaic.version = 11 : i64} {
  func.func @_net_kernel(%arg0: i32, %arg1: memref<8x64xf32, #tpu.memory_space<vmem>>, %arg2: memref<64x128xbf16, #tpu.memory_space<vmem>>, %arg3: memref<1x128xf32, #tpu.memory_space<vmem>>, %arg4: memref<8x128xbf16, #tpu.memory_space<vmem>>) attributes {dimension_semantics = [#tpu.dimension_semantics<parallel>], iteration_bounds = array<i64: 2>, scalar_prefetch = 0 : i64, scratch_operands = 0 : i64, tpu.core_type = #tpu.core_type<tc>, window_params = [{transform_indices = @transform_0, window_bounds = array<i64: 8, 64>}, {pipeline_mode = #tpu.pipeline_mode<synchronous>, transform_indices = @transform_1, window_bounds = array<i64: 64, 128>}, {pipeline_mode = #tpu.pipeline_mode<synchronous>, transform_indices = @transform_2, window_bounds = array<i64: 1, 128>}, {transform_indices = @transform_3, window_bounds = array<i64: 8, 128>}]} {
    %c0 = arith.constant 0 : index
    %c0_0 = arith.constant 0 : index
    %0 = vector.load %arg1[%c0, %c0_0] : memref<8x64xf32, #tpu.memory_space<vmem>>, vector<8x64xf32>
    %1 = arith.truncf %0 : vector<8x64xf32> to vector<8x64xbf16>
    %c0_1 = arith.constant 0 : index
    %c0_2 = arith.constant 0 : index
    %2 = vector.load %arg2[%c0_1, %c0_2] : memref<64x128xbf16, #tpu.memory_space<vmem>>, vector<64x128xbf16>
    %cst = arith.constant dense<0.000000e+00> : vector<8x128xf32>
    %3 = tpu.matmul %1, %2, %cst {dimension_numbers = #tpu.dot_dimension_numbers<[1], [0], [0], [1], [0, 0, 1, 1], [], []>} : vector<8x64xbf16>, vector<64x128xbf16>, vector<8x128xf32> -> vector<8x128xf32>
    %c0_3 = arith.constant 0 : index
    %c0_4 = arith.constant 0 : index
    %4 = vector.load %arg3[%c0_3, %c0_4] : memref<1x128xf32, #tpu.memory_space<vmem>>, vector<1x128xf32>
    %5 = vector.broadcast %4 : vector<1x128xf32> to vector<8x128xf32>
    %6 = arith.addf %3, %5 : vector<8x128xf32>
    %cst_5 = arith.constant dense<0xFF800000> : vector<8xf32>
    %7 = vector.multi_reduction <maximumf>, %6, %cst_5 [1] : vector<8x128xf32> to vector<8xf32>
    %8 = vector.shape_cast %7 : vector<8xf32> to vector<8x1xf32>
    %9 = vector.broadcast %8 : vector<8x1xf32> to vector<8x128xf32>
    %10 = arith.subf %6, %9 : vector<8x128xf32>
    %11 = math.exp %10 : vector<8x128xf32>
    %cst_6 = arith.constant dense<0.000000e+00> : vector<8xf32>
    %12 = vector.multi_reduction <add>, %11, %cst_6 [1] : vector<8x128xf32> to vector<8xf32>
    %13 = vector.shape_cast %12 : vector<8xf32> to vector<8x1xf32>
    %14 = math.log %13 : vector<8x1xf32>
    %15 = vector.broadcast %14 : vector<8x1xf32> to vector<8x128xf32>
    %16 = arith.subf %10, %15 : vector<8x128xf32>
    %17 = arith.truncf %16 : vector<8x128xf32> to vector<8x128xbf16>
    %c0_7 = arith.constant 0 : index
    %c0_8 = arith.constant 0 : index
    %18 = vector.load %arg4[%c0_7, %c0_8] : memref<8x128xbf16, #tpu.memory_space<vmem>>, vector<8x128xbf16>
    tpu.vector_store %arg4[%c0_7, %c0_8], %17 {strides = array<i32>} : memref<8x128xbf16, #tpu.memory_space<vmem>>, vector<8x128xbf16>,
    return
  }
  func.func @transform_0(%arg0: i32) -> (i32, i32) {
    %c0_i32 = arith.constant 0 : i32
    %c0_i32_0 = arith.constant 0 : i32
    return %arg0, %c0_i32 : i32, i32
  }
  func.func @transform_1(%arg0: i32) -> (i32, i32) {
    %c0_i32 = arith.constant 0 : i32
    %c0_i32_0 = arith.constant 0 : i32
    %c0_i32_1 = arith.constant 0 : i32
    return %c0_i32, %c0_i32_0 : i32, i32
  }
  func.func @transform_2(%arg0: i32) -> (i32, i32) {
    %c0_i32 = arith.constant 0 : i32
    %c0_i32_0 = arith.constant 0 : i32
    %c0_i32_1 = arith.constant 0 : i32
    return %c0_i32, %c0_i32_0 : i32, i32
  }
  func.func @transform_3(%arg0: i32) -> (i32, i32) {
    %c0_i32 = arith.constant 0 : i32
    %c0_i32_0 = arith.constant 0 : i32
    return %arg0, %c0_i32 : i32, i32
  }
}

</mosaic_0001>

<llo_original>
// kernel: tpu_custom_call.1
$region0: #{tpu_custom_call.1}
  #allocation0 [shape = 'u32[]', space=smem, size = 0x4, offset = 0x4, fixed_abs, tag = 'smem constant byte address 0x4 - core index']
  #allocation1 [shape = 'u32[72,128]{1,0:T(1,128)}', space=vmem, size = 0x9000, scoped, tag = 'internal scratch']
  %s0 = inlined_call_operand.hbm [shape: f32[10,64], index: 0, kind: input, shape index: {}]
  %s1 = inlined_call_operand.hbm [shape: bf16[64,128], index: 1, kind: input, shape index: {}]
  %s2 = inlined_call_operand.vmem [shape: f32[1,128], index: 2, kind: input, shape index: {}]
  %s3 = inlined_call_operand.hbm [shape: bf16[10,128], index: 3, kind: output, shape index: {}]
  %s4 = sld [smem:[#allocation0]]
  $region53: #{tpu_custom_call.1} parent=0
    _
  %s6 = ssub.s32 1, %s4
  %s7 = scalar_select 0, %s6, %s4
  $region1: #{tpu_custom_call.1} parent=0
    #allocation2 [shape = 'u8[8192]{0}', space=vmem, size = 0x2000, scoped, tag = 'input window, operand 0']
    #allocation3 [shape = 's32[2]{0}', space=sflag, size = 0x8, scoped, tag = 'scoped memory for tpu_custom_call.1']
    #allocation4 [shape = 's32[2]{0}', space=sflag, size = 0x8, scoped, tag = 'scoped memory for tpu_custom_call.1']
    #allocation5 [shape = 'u8[16384]{0}', space=vmem, size = 0x4000, scoped, tag = 'input window, operand 1, single buffered']
    #allocation6 [shape = 's32[1]{0}', space=sflag, size = 0x4, scoped, tag = 'scoped memory for tpu_custom_call.1']
    #allocation7 [shape = 'u8[4096]{0}', space=vmem, size = 0x1000, scoped, tag = 'output window, operand 0']
    %8 = vsyncpa [#allocation3], 0
    %s9 = scalar_lea.sflag [#allocation3], 1
    %10 = vsyncpa %s9, 0
    %11 = vsyncpa [#allocation6], 0
    %12 = vsyncpa [#allocation4], 0
    %s13 = scalar_lea.sflag [#allocation4], 1
    %14 = vsyncpa %s13, 0
    loop: start=0, step=1, limit=4
    $region2: #{tpu_custom_call.1} parent=1 // loop_pre_header
      _
    $region3: #{tpu_custom_call.1} parent=1 // loop_header
      %s16 = sphi 0, %s20
      %p17 = scmp.ge.s32.totalorder %s16, 4
      %s26 = sphi 0, %s28
      %s29 = sphi 0, %s26
      %s30 = sphi 0, %s29
      %s46 = sphi 0, %s30
      %s50 = sphi 0, %s50
      %s52 = sphi 0, %s50
      %s53 = sphi 0, %s52
      %s67 = sphi 0, %s53
      %s71 = sphi 0, %s71
      %s73 = sphi 0, %s71
      %s74 = sphi 0, %s73
      %s88 = sphi 0, %s74
      %s94 = sphi 0, %s96
      %s97 = sphi 0, %s94
      %s98 = sphi 0, %s97
      %s114 = sphi 0, %s98
    $region4: #{tpu_custom_call.1} parent=1 // loop_header_branch
      %19 = sbr.rel (%p17) target = $region8
    $region5: #{tpu_custom_call.1} parent=1 // loop_body
      %s21 = ssub.s32 %s16, 1
      %s22 = ssub.s32 %s16, 2
      %s23 = sadd.s32 %s16, 1
      %s24 = ssub.s32 %s16, %s23
      %p25 = scmp.eq.s32.totalorder %s24, 0
      %s27 = sadd.s32 %s26, 1
      %s28 = scalar_select %p25, %s26, %s27
      %p31 = pneg %p25
      %p32 = scmp.eq.s32.totalorder %s16, 1
      %p33 = por %p31, %p32
      %p34 = scmp.ne.s32.totalorder %s26, %s29
      %p35 = scmp.eq.s32.totalorder %s16, 0
      %p36 = por %p34, %p35
      %p37 = scmp.ne.s32.totalorder %s26, %s29
      %p38 = scmp.eq.s32.totalorder %s21, 1
      %p39 = por %p37, %p38
      %p40 = scmp.ne.s32.totalorder %s29, %s30
      %p41 = scmp.eq.s32.totalorder %s21, 0
      %p42 = por %p40, %p41
      %p43 = scmp.ne.s32.totalorder %s29, %s30
      %p44 = scmp.eq.s32.totalorder %s22, 1
      %p45 = por %p43, %p44
      %p47 = scmp.ne.s32.totalorder %s30, %s46
      %p48 = scmp.eq.s32.totalorder %s22, 0
      %p49 = por %p47, %p48
      %s51 = sadd.s32 %s50, 1
      %p54 = scmp.eq.s32.totalorder %s16, 1
      %p55 = scmp.ne.s32.totalorder %s50, %s52
      %p56 = scmp.eq.s32.totalorder %s16, 0
      %p57 = por %p55, %p56
      %p58 = scmp.ne.s32.totalorder %s50, %s52
      %p59 = scmp.eq.s32.totalorder %s21, 1
      %p60 = por %p58, %p59
      %p61 = scmp.ne.s32.totalorder %s52, %s53
      %p62 = scmp.eq.s32.totalorder %s21, 0
      %p63 = por %p61, %p62
      %p64 = scmp.ne.s32.totalorder %s52, %s53
      %p65 = scmp.eq.s32.totalorder %s22, 1
      %p66 = por %p64, %p65
      %p68 = scmp.ne.s32.totalorder %s53, %s67
      %p69 = scmp.eq.s32.totalorder %s22, 0
      %p70 = por %p68, %p69
      %s72 = sadd.s32 %s71, 1
      %p75 = scmp.eq.s32.totalorder %s16, 1
      %p76 = scmp.ne.s32.totalorder %s71, %s73
      %p77 = scmp.eq.s32.totalorder %s16, 0
      %p78 = por %p76, %p77
      %p79 = scmp.ne.s32.totalorder %s71, %s73
      %p80 = scmp.eq.s32.totalorder %s21, 1
      %p81 = por %p79, %p80
      %p82 = scmp.ne.s32.totalorder %s73, %s74
      %p83 = scmp.eq.s32.totalorder %s21, 0
      %p84 = por %p82, %p83
      %p85 = scmp.ne.s32.totalorder %s73, %s74
      %p86 = scmp.eq.s32.totalorder %s22, 1
      %p87 = por %p85, %p86
      %p89 = scmp.ne.s32.totalorder %s74, %s88
      %p90 = scmp.eq.s32.totalorder %s22, 0
      %p91 = por %p89, %p90
      %s92 = ssub.s32 %s16, %s23
      %p93 = scmp.eq.s32.totalorder %s92, 0
      %s95 = sadd.s32 %s94, 1
      %s96 = scalar_select %p93, %s94, %s95
      %p99 = pneg %p93
      %p100 = scmp.eq.s32.totalorder %s16, 1
      %p101 = por %p99, %p100
      %p102 = scmp.ne.s32.totalorder %s94, %s97
      %p103 = scmp.eq.s32.totalorder %s16, 0
      %p104 = por %p102, %p103
      %p105 = scmp.ne.s32.totalorder %s94, %s97
      %p106 = scmp.eq.s32.totalorder %s21, 1
      %p107 = por %p105, %p106
      %p108 = scmp.ne.s32.totalorder %s97, %s98
      %p109 = scmp.eq.s32.totalorder %s21, 0
      %p110 = por %p108, %p109
      %p111 = scmp.ne.s32.totalorder %s97, %s98
      %p112 = scmp.eq.s32.totalorder %s22, 1
      %p113 = por %p111, %p112
      %p115 = scmp.ne.s32.totalorder %s98, %s114
      %p116 = scmp.eq.s32.totalorder %s22, 0
      %p117 = por %p115, %p116
      %p118 = scmp.le.s32.totalorder 1, %s16
      %p119 = scmp.lt.s32.totalorder %s16, 3
      %p120 = pnand %p118, %p119
      %p121 = pneg %p120
      // Predicated region
      $region9: #{tpu_custom_call.1} parent=5 // pred_check
        _
      $region10: #{tpu_custom_call.1} parent=5 // pred_check_branch
        %123 = sbr.rel (%p120) target = $region12
      $region11: #{tpu_custom_call.1} parent=5 // pred_region
        %s124 = ssub.s32 %s16, 1
        // Predicated region
        $region13: #{tpu_custom_call.1} parent=11 // pred_check
          %p125 = pneg %p63
        $region14: #{tpu_custom_call.1} parent=11 // pred_check_branch
          %127 = sbr.rel (%p125) target = $region16
        $region15: #{tpu_custom_call.1} parent=11 // pred_region
          %129 = vsyncadd [#allocation6], 0
          %s130 = sshll.u32 %s1, 4
          %s131 = int_to_ptr.hbm [resolvable:$true] %s130
          %s132 = sshll.u32 [#allocation5], 4
          %s133 = int_to_ptr.vmem [resolvable:$true] %s132
          %138 = dma.hbm_to_vmem [thread:$0]  %s131, 512, %s133, [#allocation6], 64, 64, 4
        $region16: #{tpu_custom_call.1} parent=11 // pred_fallthru
          _
        // Predicated region
        $region17: #{tpu_custom_call.1} parent=11 // pred_check
          %p139 = pneg %p84
        $region18: #{tpu_custom_call.1} parent=11 // pred_check_branch
          %141 = sbr.rel (%p139) target = $region20
        $region19: #{tpu_custom_call.1} parent=11 // pred_region
          _
        $region20: #{tpu_custom_call.1} parent=11 // pred_fallthru
          _
      $region12: #{tpu_custom_call.1} parent=5 // pred_fallthru
        _
      %p142 = scmp.lt.s32.totalorder %s16, 2
      // Predicated region
      $region21: #{tpu_custom_call.1} parent=5 // pred_check
        %p143 = pneg %p142
      $region22: #{tpu_custom_call.1} parent=5 // pred_check_branch
        %145 = sbr.rel (%p143) target = $region24
      $region23: #{tpu_custom_call.1} parent=5 // pred_region
        // Predicated region
        $region25: #{tpu_custom_call.1} parent=23 // pred_check
          %p146 = pneg %p36
        $region26: #{tpu_custom_call.1} parent=23 // pred_check_branch
          %148 = sbr.rel (%p146) target = $region28
        $region27: #{tpu_custom_call.1} parent=23 // pred_region
          %s149 = sand.u32 %s26, 1
          %s150 = scalar_lea.sflag [#allocation3], %s149
          %s151 = sand.u32 %s26, 1
          %s152 = smul.addr %s151, 8
          %s153 = scalar_lea.vmem [#allocation2], %s152
          %155 = vsyncadd %s150, 0
          %s156 = smul.addr %s16, 8
          %s157 = scalar_lea.hbm %s0, %s156
          %s159 = sshll.u32 %s157, 4
          %s160 = int_to_ptr.hbm [resolvable:$true] %s159
          %s161 = sshll.u32 %s153, 4
          %s162 = int_to_ptr.vmem [resolvable:$true] %s161
          %164 = dma.hbm_to_vmem [thread:$0]  %s160, 128, %s162, %s150
        $region28: #{tpu_custom_call.1} parent=23 // pred_fallthru
          _
      $region24: #{tpu_custom_call.1} parent=5 // pred_fallthru
        _
      %p165 = scmp.le.s32.totalorder 1, %s16
      %p166 = scmp.lt.s32.totalorder %s16, 3
      %p167 = pnand %p165, %p166
      %p168 = pneg %p167
      // Predicated region
      $region29: #{tpu_custom_call.1} parent=5 // pred_check
        _
      $region30: #{tpu_custom_call.1} parent=5 // pred_check_branch
        %170 = sbr.rel (%p167) target = $region32
      $region31: #{tpu_custom_call.1} parent=5 // pred_region
        %s171 = ssub.s32 %s16, 1
        %s172 = sand.u32 %s29, 1
        %s173 = scalar_lea.sflag [#allocation3], %s172
        %s174 = sand.u32 %s29, 1
        %s175 = smul.addr %s174, 8
        %s176 = scalar_lea.vmem [#allocation2], %s175
        // Predicated region
        $region33: #{tpu_custom_call.1} parent=31 // pred_check
          %p177 = pneg %p42
        $region34: #{tpu_custom_call.1} parent=31 // pred_check_branch
          %179 = sbr.rel (%p177) target = $region36
        $region35: #{tpu_custom_call.1} parent=31 // pred_region
          %181 = dma.done %s173, 128
        $region36: #{tpu_custom_call.1} parent=31 // pred_fallthru
          _
        // Predicated region
        $region37: #{tpu_custom_call.1} parent=31 // pred_check
          %p182 = pneg %p63
        $region38: #{tpu_custom_call.1} parent=31 // pred_check_branch
          %184 = sbr.rel (%p182) target = $region40
        $region39: #{tpu_custom_call.1} parent=31 // pred_region
          %186 = dma.done [#allocation6], 512
        $region40: #{tpu_custom_call.1} parent=31 // pred_fallthru
          _
        %s187 = sand.u32 %s29, 1
        %s188 = scalar_lea.sflag [#allocation3], %s187
        %s189 = sand.u32 %s29, 1
        %s190 = smul.addr %s189, 8
        %s191 = scalar_lea.vmem [#allocation2], %s190
        %p192 = pneg %p42
        %p193 = pneg %p39
        %p194 = pneg %p63
        %p195 = pneg %p60
        %p196 = pneg %p84
        %p197 = pneg %p81
        %p198 = pneg %p110
        %p199 = pneg %p107
        %s200 = sand.u32 %s97, 1
        %s201 = scalar_lea.sflag [#allocation4], %s200
        %s202 = sand.u32 %s97, 1
        %s203 = smul.addr %s202, 4
        %s204 = scalar_lea.vmem [#allocation7], %s203
        %v206 = vld [vmem:[%s176] sm:$0xff]
        %v207 = vpack.c.bf16 %v206, %v206
        %v208 = vld [vmem:[#allocation5] sm:$0xf]
        %v209 = vld [vmem:[#allocation5 + $0x4] sm:$0xf]
        %v210 = vld [vmem:[#allocation5 + $0x8] sm:$0xf]
        %v211 = vld [vmem:[#allocation5 + $0xc] sm:$0xf]
        %v212 = vld [vmem:[#allocation5 + $0x10] sm:$0xf]
        %v213 = vld [vmem:[#allocation5 + $0x14] sm:$0xf]
        %v214 = vld [vmem:[#allocation5 + $0x18] sm:$0xf]
        %v215 = vld [vmem:[#allocation5 + $0x1c] sm:$0xf]
        %v216 = vld [vmem:[%s2] sm:$0x1]
        %v218 = vperm.slane %v216, 0
        %v228 = vunpack.c.l.b16 %v208
        %v229 = vunpack.c.l.b16 %v209
        %v230 = vunpack.c.l.b16 %v210
        %v231 = vunpack.c.l.b16 %v211
        %v232 = vunpack.c.l.b16 %v212
        %v233 = vunpack.c.l.b16 %v213
        %v234 = vunpack.c.l.b16 %v214
        %v235 = vunpack.c.l.b16 %v215
        %v236 = vpack.c.b16 %v229, %v228
        %v237 = vpack.c.b16 %v231, %v230
        %v238 = vpack.c.b16 %v233, %v232
        %v239 = vpack.c.b16 %v235, %v234
        %vm244 = vcmask 523264
        %v246 = vsel %vm244, %v207, 0
        %248 = vmatpush.bf16.msra.mxu0 0
        %249 = vmatpush.bf16.msra.mxu0 0
        %250 = vmatpush.bf16.msra.mxu0 0
        %251 = vmatpush.bf16.msra.mxu0 0
        %252 = vmatpush.bf16.msra.mxu0 %v239
        %253 = vmatpush.bf16.msra.mxu0 %v238
        %254 = vmatpush.bf16.msra.mxu0 %v237
        %255 = vmatpush.bf16.msra.mxu0 %v236
        %256 = vmatmul.bf16.gmra.mxu0 %v246
        %v257 = vpop.f32.mrf.mxu0
        %v258 = vadd.f32 %v218, %v257
        %v259 = vpop.f32.mrf.mxu0
        %260 = vdwg.mxu0
        %261 = vmax.xlane.f32.xlu0 %v258
        %v262 = vpop.xlane.xlu0 %261
        %v263 = vsub.f32 %v258, %v262
        %v264 = vmul.f32 %v263, 1.442695
        %v265 = vpow.pop %v264
        %266 = vadd.xlane.f32.xlu0 %v265
        %v267 = vpop.xlane.xlu0 %266
        %v268 = vlog2.pop %v267
        %v269 = vmul.f32 %v268, 0.6931472
        %v270 = vsub.f32 %v263, %v269
        %v271 = vpack.c.bf16 %v270, %v270
        %272 = vst [vmem:[%s204] sm:$0xf] %v271
        %s273 = sand.u32 %s97, 1
        %s274 = scalar_lea.sflag [#allocation4], %s273
        %s275 = sand.u32 %s97, 1
        %s276 = smul.addr %s275, 4
        %s277 = scalar_lea.vmem [#allocation7], %s276
        // Predicated region
        $region41: #{tpu_custom_call.1} parent=31 // pred_check
          %p278 = pneg %p107
        $region42: #{tpu_custom_call.1} parent=31 // pred_check_branch
          %280 = sbr.rel (%p278) target = $region44
        $region43: #{tpu_custom_call.1} parent=31 // pred_region
          %282 = vsyncadd %s274, 0
          %s283 = smul.addr %s21, 4
          %s284 = scalar_lea.hbm %s3, %s283
          %s286 = sshll.u32 %s277, 4
          %s287 = int_to_ptr.vmem [resolvable:$true] %s286
          %s288 = sshll.u32 %s284, 4
          %s289 = int_to_ptr.hbm [resolvable:$true] %s288
          %291 = dma.vmem_to_hbm [thread:$0]  %s287, 64, %s289, %s274
        $region44: #{tpu_custom_call.1} parent=31 // pred_fallthru
          _
      $region32: #{tpu_custom_call.1} parent=5 // pred_fallthru
        _
      %p292 = scmp.le.s32.totalorder 2, %s16
      // Predicated region
      $region45: #{tpu_custom_call.1} parent=5 // pred_check
        %p293 = pneg %p292
      $region46: #{tpu_custom_call.1} parent=5 // pred_check_branch
        %295 = sbr.rel (%p293) target = $region48
      $region47: #{tpu_custom_call.1} parent=5 // pred_region
        %s296 = ssub.s32 %s16, 2
        // Predicated region
        $region49: #{tpu_custom_call.1} parent=47 // pred_check
          %p297 = pneg %p113
        $region50: #{tpu_custom_call.1} parent=47 // pred_check_branch
          %299 = sbr.rel (%p297) target = $region52
        $region51: #{tpu_custom_call.1} parent=47 // pred_region
          %s300 = sand.u32 %s98, 1
          %s301 = scalar_lea.sflag [#allocation4], %s300
          %s302 = sand.u32 %s98, 1
          %s303 = smul.addr %s302, 4
          %s304 = scalar_lea.vmem [#allocation7], %s303
          %306 = dma.done %s301, 64
        $region52: #{tpu_custom_call.1} parent=47 // pred_fallthru
          _
      $region48: #{tpu_custom_call.1} parent=5 // pred_fallthru
        _
    $region6: #{tpu_custom_call.1} parent=1 // loop_footer
      %s20 = sadd.s32 1, %s16
    $region7: #{tpu_custom_call.1} parent=1 // loop_footer_branch
      %15 = sbr.rel target = $region3
    $region8: #{tpu_custom_call.1} parent=1 // loop_exit
      _
    %307 = vsyncpa [#allocation3], 1
    %s308 = scalar_lea.sflag [#allocation3], 1
    %309 = vsyncpa %s308, 1
    %310 = vsyncpa [#allocation6], 1
    %311 = vsyncpa [#allocation4], 1
    %s312 = scalar_lea.sflag [#allocation4], 1
    %313 = vsyncpa %s312, 1

</llo_original>
